<compile_context>
chip_gen: v7x
topology: tpu7x:2x2x1
jax: 0.10.0
libtpu: 0.0.40
codegen_flags: <defaults>
</compile_context>

<pallas_src>
import math
from functools import partial

import jax
import jax.numpy as jnp
from jax import lax
from jax.experimental import pallas as pl
from jax.experimental.pallas import tpu as pltpu


def _cross_attention_kernel(x_ref, y_ref,
                            wq_ref, bq_ref,
                            wk_ref, bk_ref,
                            wv_ref, bv_ref,
                            wo_ref, bo_ref,
                            o_ref, acc_ref, *, d_head):
    # x_ref:  (1, S_q, D_e)         y_ref:  (1, S_kv, D_c)
    # wq_ref: (1, D_e, d_head)      bq_ref: (1, 1, d_head)
    # wk_ref: (1, D_c, d_head)      bk_ref: (1, 1, d_head)
    # wv_ref: (1, D_c, d_head)      bv_ref: (1, 1, d_head)
    # wo_ref: (1, d_head, D_e)      bo_ref: (1, D_e)
    # o_ref:  (1, S_q, D_e)         acc_ref: (S_q, D_e) f32 scratch
    h = pl.program_id(1)

    @pl.when(h == 0)
    def _():
        acc_ref[...] = jnp.zeros_like(acc_ref)

    x = x_ref[0]                       # (S_q, D_e)   native dtype
    y = y_ref[0]                       # (S_kv, D_c)  native dtype
    wq = wq_ref[0]                     # (D_e, d_head)
    wk = wk_ref[0]                     # (D_c, d_head)
    wv = wv_ref[0]                     # (D_c, d_head)
    wo = wo_ref[0]                     # (d_head, D_e)

    cdt = x.dtype                      # MXU operand dtype (bf16 stays bf16)
    scale = 1.0 / math.sqrt(d_head)

    # Per-head projections; fold the attention scale into q (S_q, d_head)
    # instead of scaling the (S_q, S_kv) score matrix.
    q = ((jnp.dot(x, wq, preferred_element_type=jnp.float32) + bq_ref[0])
         * scale).astype(cdt)                                  # (S_q, dh)
    k = (jnp.dot(y, wk, preferred_element_type=jnp.float32)
         + bk_ref[0]).astype(cdt)                              # (S_kv, dh)
    v = (jnp.dot(y, wv, preferred_element_type=jnp.float32)
         + bv_ref[0]).astype(cdt)                              # (S_kv, dh)

    # q @ k^T without an explicit transpose: contract the last dims.
    s = lax.dot_general(q, k, (((1,), (1,)), ((), ())),
                        preferred_element_type=jnp.float32)    # (S_q, S_kv) f32

    # Numerically-stable softmax; keep stats in f32 (v5e has no bf16 VPU/EUP).
    m = jnp.max(s, axis=-1, keepdims=True)
    e = jnp.exp(s - m)
    l = jnp.sum(e, axis=-1, keepdims=True)                     # (S_q, 1)

    # Normalize AFTER the PV matmul (on the small (S_q, d_head) tile) using
    # the EUP reciprocal instead of a VALU divide over (S_q, S_kv).
    pv = jnp.dot(e.astype(cdt), v, preferred_element_type=jnp.float32)
    head_out = pv * pl.reciprocal(l, approx=True)              # (S_q, dh) f32

    # Fused out_proj: accumulate this head's contribution into the lane-dense
    # (S_q, D_e) f32 accumulator.
    acc_ref[...] += jnp.dot(head_out.astype(cdt), wo,
                            preferred_element_type=jnp.float32)

    @pl.when(h == pl.num_programs(1) - 1)
    def _():
        o_ref[0] = (acc_ref[...]
                    + bo_ref[...].astype(jnp.float32)).astype(o_ref.dtype)


def cross_attention(x, y, w_q, b_q, w_k, b_k, w_v, b_v, w_out, b_out, *,
                    n_heads):
    """x: (B, S_q, D_e); y: (B, S_kv, D_c).
    w_q: (D_e, D_e), w_k/w_v: (D_c, D_e), w_out: (D_e, D_e); biases (D_e,)."""
    B, Sq, De = x.shape
    _, Skv, Dc = y.shape
    dh = De // n_heads
    H = n_heads

    # Host-side (one-time) re-layout so each head's weight slice is a full
    # trailing block -> clean BlockSpec tiling, no in-kernel lane slicing.
    wq_h = w_q.reshape(De, H, dh).transpose(1, 0, 2)    # (H, De, dh)
    wk_h = w_k.reshape(Dc, H, dh).transpose(1, 0, 2)    # (H, Dc, dh)
    wv_h = w_v.reshape(Dc, H, dh).transpose(1, 0, 2)    # (H, Dc, dh)
    wo_h = w_out.reshape(H, dh, De)                     # (H, dh, De)
    bq_h = b_q.reshape(H, 1, dh)
    bk_h = b_k.reshape(H, 1, dh)
    bv_h = b_v.reshape(H, 1, dh)
    bo_2 = b_out.reshape(1, De)

    kernel = partial(_cross_attention_kernel, d_head=dh)

    return pl.pallas_call(
        kernel,
        out_shape=jax.ShapeDtypeStruct((B, Sq, De), x.dtype),
        grid_spec=pltpu.PrefetchScalarGridSpec(
            num_scalar_prefetch=0,
            grid=(B, H),
            in_specs=[
                pl.BlockSpec((1, Sq, De), lambda b, h: (b, 0, 0)),   # x
                pl.BlockSpec((1, Skv, Dc), lambda b, h: (b, 0, 0)),  # y
                pl.BlockSpec((1, De, dh), lambda b, h: (h, 0, 0)),   # w_q[h]
                pl.BlockSpec((1, 1, dh), lambda b, h: (h, 0, 0)),    # b_q[h]
                pl.BlockSpec((1, Dc, dh), lambda b, h: (h, 0, 0)),   # w_k[h]
                pl.BlockSpec((1, 1, dh), lambda b, h: (h, 0, 0)),    # b_k[h]
                pl.BlockSpec((1, Dc, dh), lambda b, h: (h, 0, 0)),   # w_v[h]
                pl.BlockSpec((1, 1, dh), lambda b, h: (h, 0, 0)),    # b_v[h]
                pl.BlockSpec((1, dh, De), lambda b, h: (h, 0, 0)),   # w_out[h]
                pl.BlockSpec((1, De), lambda b, h: (0, 0)),          # b_out
            ],
            out_specs=pl.BlockSpec((1, Sq, De), lambda b, h: (b, 0, 0)),
            scratch_shapes=[pltpu.VMEM((Sq, De), jnp.float32)],
        ),
        compiler_params=pltpu.CompilerParams(
            dimension_semantics=("parallel", "arbitrary")),
    )(x, y, wq_h, bq_h, wk_h, bk_h, wv_h, bv_h, wo_h, bo_2)


def _reference(x, y, w_q, b_q, w_k, b_k, w_v, b_v, w_out, b_out, n_heads):
    """Pure-JAX reference mirroring the PyTorch CrossAttention.forward."""
    B, Sq, De = x.shape
    Skv = y.shape[1]
    dh = De // n_heads
    q = x @ w_q + b_q
    k = y @ w_k + b_k
    v = y @ w_v + b_v

    def heads(t, S):
        return t.reshape(B, S, n_heads, dh).transpose(0, 2, 1, 3)

    q, k, v = heads(q, Sq), heads(k, Skv), heads(v, Skv)
    w = jnp.einsum('bhqd,bhkd->bhqk', q, k) / math.sqrt(dh)
    w = jax.nn.softmax(w, axis=-1)
    o = jnp.einsum('bhqk,bhkd->bhqd', w, v)
    o = o.transpose(0, 2, 1, 3).reshape(B, Sq, De)
    return o @ w_out + b_out


if __name__ == "__main__":
    # Small shapes consistent with the module's forward.
    B, Sq, Skv = 2, 8, 16
    d_embed, d_cross, n_heads = 32, 48, 4

    key = jax.random.PRNGKey(0)
    kx, ky, kwq, kbq, kwk, kbk, kwv, kbv, kwo, kbo = jax.random.split(key, 10)

    x = jax.random.normal(kx, (B, Sq, d_embed), dtype=jnp.float32)
    y = jax.random.normal(ky, (B, Skv, d_cross), dtype=jnp.float32)

    w_q = jax.random.normal(kwq, (d_embed, d_embed), dtype=jnp.float32) * 0.05
    b_q = jax.random.normal(kbq, (d_embed,), dtype=jnp.float32) * 0.05
    w_k = jax.random.normal(kwk, (d_cross, d_embed), dtype=jnp.float32) * 0.05
    b_k = jax.random.normal(kbk, (d_embed,), dtype=jnp.float32) * 0.05
    w_v = jax.random.normal(kwv, (d_cross, d_embed), dtype=jnp.float32) * 0.05
    b_v = jax.random.normal(kbv, (d_embed,), dtype=jnp.float32) * 0.05
    w_out = jax.random.normal(kwo, (d_embed, d_embed), dtype=jnp.float32) * 0.05
    b_out = jax.random.normal(kbo, (d_embed,), dtype=jnp.float32) * 0.05

    out = cross_attention(x, y, w_q, b_q, w_k, b_k, w_v, b_v, w_out, b_out,
                          n_heads=n_heads)
    out = jax.block_until_ready(out)

    ref = _reference(x, y, w_q, b_q, w_k, b_k, w_v, b_v, w_out, b_out, n_heads)
    assert out.shape == (B, Sq, d_embed)
    # Slightly relaxed tolerance: pl.reciprocal(approx=True) uses the EUP
    # approximate reciprocal.
    assert jnp.allclose(out, ref, atol=2e-3, rtol=2e-3), "mismatch vs reference"

    print("KERNEL_OK")
</pallas_src>

<mosaic_0001>
module attributes {stable_mosaic.version = 11 : i64} {
  func.func @_cross_attention_kernel(%arg0: i32, %arg1: i32, %arg2: memref<1x8x32xf32, #tpu.memory_space<vmem>>, %arg3: memref<1x16x48xf32, #tpu.memory_space<vmem>>, %arg4: memref<1x32x8xf32, #tpu.memory_space<vmem>>, %arg5: memref<1x1x8xf32, #tpu.memory_space<vmem>>, %arg6: memref<1x48x8xf32, #tpu.memory_space<vmem>>, %arg7: memref<1x1x8xf32, #tpu.memory_space<vmem>>, %arg8: memref<1x48x8xf32, #tpu.memory_space<vmem>>, %arg9: memref<1x1x8xf32, #tpu.memory_space<vmem>>, %arg10: memref<1x8x32xf32, #tpu.memory_space<vmem>>, %arg11: memref<1x32xf32, #tpu.memory_space<vmem>>, %arg12: memref<1x8x32xf32, #tpu.memory_space<vmem>>, %arg13: memref<8x32xf32, #tpu.memory_space<vmem>>) attributes {dimension_semantics = [#tpu.dimension_semantics<parallel>, #tpu.dimension_semantics<arbitrary>], iteration_bounds = array<i64: 2, 4>, scalar_prefetch = 0 : i64, scratch_operands = 1 : i64, tpu.core_type = #tpu.core_type<tc>, window_params = [{transform_indices = @transform_0, window_bounds = array<i64: 1, 8, 32>}, {transform_indices = @transform_1, window_bounds = array<i64: 1, 16, 48>}, {transform_indices = @transform_2, window_bounds = array<i64: 1, 32, 8>}, {transform_indices = @transform_3, window_bounds = array<i64: 1, 1, 8>}, {transform_indices = @transform_4, window_bounds = array<i64: 1, 48, 8>}, {transform_indices = @transform_5, window_bounds = array<i64: 1, 1, 8>}, {transform_indices = @transform_6, window_bounds = array<i64: 1, 48, 8>}, {transform_indices = @transform_7, window_bounds = array<i64: 1, 1, 8>}, {transform_indices = @transform_8, window_bounds = array<i64: 1, 8, 32>}, {pipeline_mode = #tpu.pipeline_mode<synchronous>, transform_indices = @transform_9, window_bounds = array<i64: 1, 32>}, {transform_indices = @transform_10, window_bounds = array<i64: 1, 8, 32>}]} {
    %c0_i32 = arith.constant 0 : i32
    %0 = arith.cmpi eq, %arg1, %c0_i32 : i32
    %1 = arith.extui %0 : i1 to i32
    %c0_i32_0 = arith.constant 0 : i32
    %2 = arith.cmpi ne, %1, %c0_i32_0 : i32
    scf.if %2 {
      %cst_40 = arith.constant 0.000000e+00 : f32
      %51 = vector.broadcast %cst_40 : f32 to vector<8x32xf32>
      %c0_41 = arith.constant 0 : index
      %c0_42 = arith.constant 0 : index
      %52 = vector.load %arg13[%c0_41, %c0_42] : memref<8x32xf32, #tpu.memory_space<vmem>>, vector<8x32xf32>
      tpu.vector_store %arg13[%c0_41, %c0_42], %51 {strides = array<i32>} : memref<8x32xf32, #tpu.memory_space<vmem>>, vector<8x32xf32>,
    } else {
    }
    %c0 = arith.constant 0 : index
    %c0_1 = arith.constant 0 : index
    %c0_2 = arith.constant 0 : index
    %3 = vector.load %arg2[%c0, %c0_1, %c0_2] : memref<1x8x32xf32, #tpu.memory_space<vmem>>, vector<1x8x32xf32>
    %4 = vector.shape_cast %3 : vector<1x8x32xf32> to vector<8x32xf32>
    %c0_3 = arith.constant 0 : index
    %c0_4 = arith.constant 0 : index
    %c0_5 = arith.constant 0 : index
    %5 = vector.load %arg3[%c0_3, %c0_4, %c0_5] : memref<1x16x48xf32, #tpu.memory_space<vmem>>, vector<1x16x48xf32>
    %6 = vector.shape_cast %5 : vector<1x16x48xf32> to vector<16x48xf32>
    %c0_6 = arith.constant 0 : index
    %c0_7 = arith.constant 0 : index
    %c0_8 = arith.constant 0 : index
    %7 = vector.load %arg4[%c0_6, %c0_7, %c0_8] : memref<1x32x8xf32, #tpu.memory_space<vmem>>, vector<1x32x8xf32>
    %8 = vector.shape_cast %7 : vector<1x32x8xf32> to vector<32x8xf32>
    %c0_9 = arith.constant 0 : index
    %c0_10 = arith.constant 0 : index
    %c0_11 = arith.constant 0 : index
    %9 = vector.load %arg6[%c0_9, %c0_10, %c0_11] : memref<1x48x8xf32, #tpu.memory_space<vmem>>, vector<1x48x8xf32>
    %10 = vector.shape_cast %9 : vector<1x48x8xf32> to vector<48x8xf32>
    %c0_12 = arith.constant 0 : index
    %c0_13 = arith.constant 0 : index
    %c0_14 = arith.constant 0 : index
    %11 = vector.load %arg8[%c0_12, %c0_13, %c0_14] : memref<1x48x8xf32, #tpu.memory_space<vmem>>, vector<1x48x8xf32>
    %12 = vector.shape_cast %11 : vector<1x48x8xf32> to vector<48x8xf32>
    %c0_15 = arith.constant 0 : index
    %c0_16 = arith.constant 0 : index
    %c0_17 = arith.constant 0 : index
    %13 = vector.load %arg10[%c0_15, %c0_16, %c0_17] : memref<1x8x32xf32, #tpu.memory_space<vmem>>, vector<1x8x32xf32>
    %14 = vector.shape_cast %13 : vector<1x8x32xf32> to vector<8x32xf32>
    %cst = arith.constant dense<0.000000e+00> : vector<8x8xf32>
    %15 = tpu.matmul %4, %8, %cst {dimension_numbers = #tpu.dot_dimension_numbers<[1], [0], [0], [1], [0, 0, 1, 1], [], []>} : vector<8x32xf32>, vector<32x8xf32>, vector<8x8xf32> -> vector<8x8xf32>
    %c0_18 = arith.constant 0 : index
    %c0_19 = arith.constant 0 : index
    %c0_20 = arith.constant 0 : index
    %16 = vector.load %arg5[%c0_18, %c0_19, %c0_20] : memref<1x1x8xf32, #tpu.memory_space<vmem>>, vector<1x1x8xf32>
    %17 = vector.shape_cast %16 : vector<1x1x8xf32> to vector<1x8xf32>
    %18 = vector.broadcast %17 : vector<1x8xf32> to vector<8x8xf32>
    %19 = arith.addf %15, %18 : vector<8x8xf32>
    %cst_21 = arith.constant 0.353553385 : f32
    %20 = vector.broadcast %cst_21 : f32 to vector<8x8xf32>
    %21 = arith.mulf %19, %20 : vector<8x8xf32>
    %cst_22 = arith.constant dense<0.000000e+00> : vector<16x8xf32>
    %22 = tpu.matmul %6, %10, %cst_22 {dimension_numbers = #tpu.dot_dimension_numbers<[1], [0], [0], [1], [0, 0, 1, 1], [], []>} : vector<16x48xf32>, vector<48x8xf32>, vector<16x8xf32> -> vector<16x8xf32>
    %c0_23 = arith.constant 0 : index
    %c0_24 = arith.constant 0 : index
    %c0_25 = arith.constant 0 : index
    %23 = vector.load %arg7[%c0_23, %c0_24, %c0_25] : memref<1x1x8xf32, #tpu.memory_space<vmem>>, vector<1x1x8xf32>
    %24 = vector.shape_cast %23 : vector<1x1x8xf32> to vector<1x8xf32>
    %25 = vector.broadcast %24 : vector<1x8xf32> to vector<16x8xf32>
    %26 = arith.addf %22, %25 : vector<16x8xf32>
    %cst_26 = arith.constant dense<0.000000e+00> : vector<16x8xf32>
    %27 = tpu.matmul %6, %12, %cst_26 {dimension_numbers = #tpu.dot_dimension_numbers<[1], [0], [0], [1], [0, 0, 1, 1], [], []>} : vector<16x48xf32>, vector<48x8xf32>, vector<16x8xf32> -> vector<16x8xf32>
    %c0_27 = arith.constant 0 : index
    %c0_28 = arith.constant 0 : index
    %c0_29 = arith.constant 0 : index
    %28 = vector.load %arg9[%c0_27, %c0_28, %c0_29] : memref<1x1x8xf32, #tpu.memory_space<vmem>>, vector<1x1x8xf32>
    %29 = vector.shape_cast %28 : vector<1x1x8xf32> to vector<1x8xf32>
    %30 = vector.broadcast %29 : vector<1x8xf32> to vector<16x8xf32>
    %31 = arith.addf %27, %30 : vector<16x8xf32>
    %cst_30 = arith.constant dense<0.000000e+00> : vector<8x16xf32>
    %32 = tpu.matmul %21, %26, %cst_30 {dimension_numbers = #tpu.dot_dimension_numbers<[1], [1], [0], [0], [0, 0, 1, 0], [], []>} : vector<8x8xf32>, vector<16x8xf32>, vector<8x16xf32> -> vector<8x16xf32>
    %cst_31 = arith.constant dense<0xFF800000> : vector<8xf32>
    %33 = vector.multi_reduction <maximumf>, %32, %cst_31 [1] : vector<8x16xf32> to vector<8xf32>
    %34 = vector.shape_cast %33 : vector<8xf32> to vector<8x1xf32>
    %35 = vector.broadcast %34 : vector<8x1xf32> to vector<8x16xf32>
    %36 = arith.subf %32, %35 : vector<8x16xf32>
    %37 = math.exp %36 : vector<8x16xf32>
    %cst_32 = arith.constant dense<0.000000e+00> : vector<8xf32>
    %38 = vector.multi_reduction <add>, %37, %cst_32 [1] : vector<8x16xf32> to vector<8xf32>
    %39 = vector.shape_cast %38 : vector<8xf32> to vector<8x1xf32>
    %cst_33 = arith.constant dense<0.000000e+00> : vector<8x8xf32>
    %40 = tpu.matmul %37, %31, %cst_33 {dimension_numbers = #tpu.dot_dimension_numbers<[1], [0], [0], [1], [0, 0, 1, 1], [], []>} : vector<8x16xf32>, vector<16x8xf32>, vector<8x8xf32> -> vector<8x8xf32>
    %41 = tpu.reciprocal %39 {approx = true} : vector<8x1xf32> -> vector<8x1xf32>
    %42 = vector.broadcast %41 : vector<8x1xf32> to vector<8x8xf32>
    %43 = arith.mulf %40, %42 : vector<8x8xf32>
    %c0_34 = arith.constant 0 : index
    %c0_35 = arith.constant 0 : index
    %44 = vector.load %arg13[%c0_34, %c0_35] : memref<8x32xf32, #tpu.memory_space<vmem>>, vector<8x32xf32>
    %cst_36 = arith.constant dense<0.000000e+00> : vector<8x32xf32>
    %45 = tpu.matmul %43, %14, %cst_36 {dimension_numbers = #tpu.dot_dimension_numbers<[1], [0], [0], [1], [0, 0, 1, 1], [], []>} : vector<8x8xf32>, vector<8x32xf32>, vector<8x32xf32> -> vector<8x32xf32>
    %46 = arith.addf %44, %45 : vector<8x32xf32>
    %c0_37 = arith.constant 0 : index
    %c0_38 = arith.constant 0 : index
    %47 = vector.load %arg13[%c0_37, %c0_38] : memref<8x32xf32, #tpu.memory_space<vmem>>, vector<8x32xf32>
    tpu.vector_store %arg13[%c0_37, %c0_38], %46 {strides = array<i32>} : memref<8x32xf32, #tpu.memory_space<vmem>>, vector<8x32xf32>,
    %c3_i32 = arith.constant 3 : i32
    %48 = arith.cmpi eq, %arg1, %c3_i32 : i32
    %49 = arith.extui %48 : i1 to i32
    %c0_i32_39 = arith.constant 0 : i32
    %50 = arith.cmpi ne, %49, %c0_i32_39 : i32
    scf.if %50 {
      %c0_40 = arith.constant 0 : index
      %c0_41 = arith.constant 0 : index
      %51 = vector.load %arg13[%c0_40, %c0_41] : memref<8x32xf32, #tpu.memory_space<vmem>>, vector<8x32xf32>
      %c0_42 = arith.constant 0 : index
      %c0_43 = arith.constant 0 : index
      %52 = vector.load %arg11[%c0_42, %c0_43] : memref<1x32xf32, #tpu.memory_space<vmem>>, vector<1x32xf32>
      %53 = vector.broadcast %52 : vector<1x32xf32> to vector<8x32xf32>
      %54 = arith.addf %51, %53 : vector<8x32xf32>
      %c0_44 = arith.constant 0 : index
      %c0_45 = arith.constant 0 : index
      %c0_46 = arith.constant 0 : index
      %55 = vector.load %arg12[%c0_44, %c0_45, %c0_46] : memref<1x8x32xf32, #tpu.memory_space<vmem>>, vector<1x8x32xf32>
      %56 = vector.shape_cast %55 : vector<1x8x32xf32> to vector<8x32xf32>
      %57 = vector.shape_cast %54 : vector<8x32xf32> to vector<1x8x32xf32>
      tpu.vector_store %arg12[%c0_44, %c0_45, %c0_46], %57 {strides = array<i32>} : memref<1x8x32xf32, #tpu.memory_space<vmem>>, vector<1x8x32xf32>,
    } else {
    }
    return
  }
  func.func @transform_0(%arg0: i32, %arg1: i32) -> (i32, i32, i32) {
    %c0_i32 = arith.constant 0 : i32
    %c0_i32_0 = arith.constant 0 : i32
    %c0_i32_1 = arith.constant 0 : i32
    return %arg0, %c0_i32, %c0_i32_0 : i32, i32, i32
  }
  func.func @transform_1(%arg0: i32, %arg1: i32) -> (i32, i32, i32) {
    %c0_i32 = arith.constant 0 : i32
    %c0_i32_0 = arith.constant 0 : i32
    %c0_i32_1 = arith.constant 0 : i32
    return %arg0, %c0_i32, %c0_i32_0 : i32, i32, i32
  }
  func.func @transform_2(%arg0: i32, %arg1: i32) -> (i32, i32, i32) {
    %c0_i32 = arith.constant 0 : i32
    %c0_i32_0 = arith.constant 0 : i32
    %c0_i32_1 = arith.constant 0 : i32
    return %arg1, %c0_i32, %c0_i32_0 : i32, i32, i32
  }
  func.func @transform_3(%arg0: i32, %arg1: i32) -> (i32, i32, i32) {
    %c0_i32 = arith.constant 0 : i32
    %c0_i32_0 = arith.constant 0 : i32
    %c0_i32_1 = arith.constant 0 : i32
    return %arg1, %c0_i32, %c0_i32_0 : i32, i32, i32
  }
  func.func @transform_4(%arg0: i32, %arg1: i32) -> (i32, i32, i32) {
    %c0_i32 = arith.constant 0 : i32
    %c0_i32_0 = arith.constant 0 : i32
    %c0_i32_1 = arith.constant 0 : i32
    return %arg1, %c0_i32, %c0_i32_0 : i32, i32, i32
  }
  func.func @transform_5(%arg0: i32, %arg1: i32) -> (i32, i32, i32) {
    %c0_i32 = arith.constant 0 : i32
    %c0_i32_0 = arith.constant 0 : i32
    %c0_i32_1 = arith.constant 0 : i32
    return %arg1, %c0_i32, %c0_i32_0 : i32, i32, i32
  }
  func.func @transform_6(%arg0: i32, %arg1: i32) -> (i32, i32, i32) {
    %c0_i32 = arith.constant 0 : i32
    %c0_i32_0 = arith.constant 0 : i32
    %c0_i32_1 = arith.constant 0 : i32
    return %arg1, %c0_i32, %c0_i32_0 : i32, i32, i32
  }
  func.func @transform_7(%arg0: i32, %arg1: i32) -> (i32, i32, i32) {
    %c0_i32 = arith.constant 0 : i32
    %c0_i32_0 = arith.constant 0 : i32
    %c0_i32_1 = arith.constant 0 : i32
    return %arg1, %c0_i32, %c0_i32_0 : i32, i32, i32
  }
  func.func @transform_8(%arg0: i32, %arg1: i32) -> (i32, i32, i32) {
    %c0_i32 = arith.constant 0 : i32
    %c0_i32_0 = arith.constant 0 : i32
    %c0_i32_1 = arith.constant 0 : i32
    return %arg1, %c0_i32, %c0_i32_0 : i32, i32, i32
  }
  func.func @transform_9(%arg0: i32, %arg1: i32) -> (i32, i32) {
    %c0_i32 = arith.constant 0 : i32
    %c0_i32_0 = arith.constant 0 : i32
    %c0_i32_1 = arith.constant 0 : i32
    return %c0_i32, %c0_i32_0 : i32, i32
  }
  func.func @transform_10(%arg0: i32, %arg1: i32) -> (i32, i32, i32) {
    %c0_i32 = arith.constant 0 : i32
    %c0_i32_0 = arith.constant 0 : i32
    %c0_i32_1 = arith.constant 0 : i32
    return %arg0, %c0_i32, %c0_i32_0 : i32, i32, i32
  }
}

</mosaic_0001>

<llo_original>
// kernel: tpu_custom_call.1
$region0: #{tpu_custom_call.1}
  #allocation0 [shape = 'u32[]', space=smem, size = 0x4, offset = 0x4, fixed_abs, tag = 'smem constant byte address 0x4 - core index']
  #allocation1 [shape = 'u32[144,128]{1,0:T(1,128)}', space=vmem, size = 0x12000, scoped, tag = 'internal scratch']
  #allocation2 [shape = 'f32[8,32]{1,0:T(8,128)}', space=vmem, size = 0x1000, scoped, tag = 'scratch operand']
  %s0 = inlined_call_operand.vmem [shape: f32[2,8,32], index: 0, kind: input, shape index: {}]
  %s1 = inlined_call_operand.vmem [shape: f32[2,16,48], index: 1, kind: input, shape index: {}]
  %s2 = inlined_call_operand.vmem [shape: f32[4,32,8], index: 2, kind: input, shape index: {}]
  %s3 = inlined_call_operand.vmem [shape: f32[4,1,8], index: 3, kind: input, shape index: {}]
  %s4 = inlined_call_operand.vmem [shape: f32[4,48,8], index: 4, kind: input, shape index: {}]
  %s5 = inlined_call_operand.vmem [shape: f32[4,1,8], index: 5, kind: input, shape index: {}]
  %s6 = inlined_call_operand.vmem [shape: f32[4,48,8], index: 6, kind: input, shape index: {}]
  %s7 = inlined_call_operand.vmem [shape: f32[4,1,8], index: 7, kind: input, shape index: {}]
  %s8 = inlined_call_operand.vmem [shape: f32[4,8,32], index: 8, kind: input, shape index: {}]
  %s9 = inlined_call_operand.vmem [shape: f32[1,32], index: 9, kind: input, shape index: {}]
  %s10 = inlined_call_operand.hbm [shape: f32[2,8,32], index: 10, kind: output, shape index: {}]
  %s11 = sld [smem:[#allocation0]]
  $region81: #{tpu_custom_call.1} parent=0
    _
  %s13 = ssub.s32 1, %s11
  %s14 = scalar_select 0, %s13, %s11
  $region1: #{tpu_custom_call.1} parent=0
    #allocation3 [shape = 'u8[8192]{0}', space=vmem, size = 0x2000, scoped, tag = 'output window, operand 0']
    #allocation4 [shape = 's32[2]{0}', space=sflag, size = 0x8, scoped, tag = 'scoped memory for tpu_custom_call.1']
    %15 = vsyncpa [#allocation4], 0
    %s16 = scalar_lea.sflag [#allocation4], 1
    %17 = vsyncpa %s16, 0
    loop: start=0, step=1, limit=10
    $region2: #{tpu_custom_call.1} parent=1 // loop_pre_header
      _
    $region3: #{tpu_custom_call.1} parent=1 // loop_header
      %s19 = sphi 0, %s23
      %p20 = scmp.ge.s32.totalorder %s19, 10
      %s26 = sphi 0, %s38
      %s27 = sphi 0, %s34
      %s28 = sphi 0, %s26
      %s29 = sphi 0, %s27
      %s30 = sphi 0, %s28
      %s31 = sphi 0, %s29
      %s41 = sphi 0, %s43
      %s44 = sphi 0, %s41
      %s45 = sphi 0, %s44
      %s61 = sphi 0, %s45
      %s67 = sphi 0, %s69
      %s70 = sphi 0, %s67
      %s71 = sphi 0, %s70
      %s87 = sphi 0, %s71
      %s93 = sphi 0, %s95
      %s96 = sphi 0, %s93
      %s97 = sphi 0, %s96
      %s113 = sphi 0, %s97
      %s119 = sphi 0, %s121
      %s122 = sphi 0, %s119
      %s123 = sphi 0, %s122
      %s139 = sphi 0, %s123
      %s145 = sphi 0, %s147
      %s148 = sphi 0, %s145
      %s149 = sphi 0, %s148
      %s165 = sphi 0, %s149
      %s171 = sphi 0, %s173
      %s174 = sphi 0, %s171
      %s175 = sphi 0, %s174
      %s191 = sphi 0, %s175
      %s197 = sphi 0, %s199
      %s200 = sphi 0, %s197
      %s201 = sphi 0, %s200
      %s217 = sphi 0, %s201
      %s223 = sphi 0, %s225
      %s226 = sphi 0, %s223
      %s227 = sphi 0, %s226
      %s243 = sphi 0, %s227
      %s249 = sphi 0, %s251
      %s252 = sphi 0, %s249
      %s253 = sphi 0, %s252
      %s269 = sphi 0, %s253
      %s273 = sphi 0, %s273
      %s275 = sphi 0, %s273
      %s276 = sphi 0, %s275
      %s290 = sphi 0, %s276
      %s296 = sphi 0, %s298
      %s299 = sphi 0, %s296
      %s300 = sphi 0, %s299
      %s316 = sphi 0, %s300
    $region4: #{tpu_custom_call.1} parent=1 // loop_header_branch
      %22 = sbr.rel (%p20) target = $region8
    $region5: #{tpu_custom_call.1} parent=1 // loop_body
      %s24 = ssub.s32 %s19, 1
      %s25 = ssub.s32 %s19, 2
      %s32 = sadd.s32 1, %s27
      %p33 = scmp.ge.s32.totalorder %s32, 4
      %s34 = scalar_select %p33, 0, %s32
      %s35 = sadd.s32 1, %s26
      %s36 = scalar_select %p33, %s35, %s26
      %p37 = scmp.ge.s32.totalorder %s36, 2
      %s38 = scalar_select %p37, 0, %s36
      %s39 = ssub.s32 %s26, %s38
      %p40 = scmp.eq.s32.totalorder %s39, 0
      %s42 = sadd.s32 %s41, 1
      %s43 = scalar_select %p40, %s41, %s42
      %p46 = pneg %p40
      %p47 = scmp.eq.s32.totalorder %s19, 7
      %p48 = por %p46, %p47
      %p49 = scmp.ne.s32.totalorder %s41, %s44
      %p50 = scmp.eq.s32.totalorder %s19, 0
      %p51 = por %p49, %p50
      %p52 = scmp.ne.s32.totalorder %s41, %s44
      %p53 = scmp.eq.s32.totalorder %s24, 7
      %p54 = por %p52, %p53
      %p55 = scmp.ne.s32.totalorder %s44, %s45
      %p56 = scmp.eq.s32.totalorder %s24, 0
      %p57 = por %p55, %p56
      %p58 = scmp.ne.s32.totalorder %s44, %s45
      %p59 = scmp.eq.s32.totalorder %s25, 7
      %p60 = por %p58, %p59
      %p62 = scmp.ne.s32.totalorder %s45, %s61
      %p63 = scmp.eq.s32.totalorder %s25, 0
      %p64 = por %p62, %p63
      %s65 = ssub.s32 %s26, %s38
      %p66 = scmp.eq.s32.totalorder %s65, 0
      %s68 = sadd.s32 %s67, 1
      %s69 = scalar_select %p66, %s67, %s68
      %p72 = pneg %p66
      %p73 = scmp.eq.s32.totalorder %s19, 7
      %p74 = por %p72, %p73
      %p75 = scmp.ne.s32.totalorder %s67, %s70
      %p76 = scmp.eq.s32.totalorder %s19, 0
      %p77 = por %p75, %p76
      %p78 = scmp.ne.s32.totalorder %s67, %s70
      %p79 = scmp.eq.s32.totalorder %s24, 7
      %p80 = por %p78, %p79
      %p81 = scmp.ne.s32.totalorder %s70, %s71
      %p82 = scmp.eq.s32.totalorder %s24, 0
      %p83 = por %p81, %p82
      %p84 = scmp.ne.s32.totalorder %s70, %s71
      %p85 = scmp.eq.s32.totalorder %s25, 7
      %p86 = por %p84, %p85
      %p88 = scmp.ne.s32.totalorder %s71, %s87
      %p89 = scmp.eq.s32.totalorder %s25, 0
      %p90 = por %p88, %p89
      %s91 = ssub.s32 %s27, %s34
      %p92 = scmp.eq.s32.totalorder %s91, 0
      %s94 = sadd.s32 %s93, 1
      %s95 = scalar_select %p92, %s93, %s94
      %p98 = pneg %p92
      %p99 = scmp.eq.s32.totalorder %s19, 7
      %p100 = por %p98, %p99
      %p101 = scmp.ne.s32.totalorder %s93, %s96
      %p102 = scmp.eq.s32.totalorder %s19, 0
      %p103 = por %p101, %p102
      %p104 = scmp.ne.s32.totalorder %s93, %s96
      %p105 = scmp.eq.s32.totalorder %s24, 7
      %p106 = por %p104, %p105
      %p107 = scmp.ne.s32.totalorder %s96, %s97
      %p108 = scmp.eq.s32.totalorder %s24, 0
      %p109 = por %p107, %p108
      %p110 = scmp.ne.s32.totalorder %s96, %s97
      %p111 = scmp.eq.s32.totalorder %s25, 7
      %p112 = por %p110, %p111
      %p114 = scmp.ne.s32.totalorder %s97, %s113
      %p115 = scmp.eq.s32.totalorder %s25, 0
      %p116 = por %p114, %p115
      %s117 = ssub.s32 %s27, %s34
      %p118 = scmp.eq.s32.totalorder %s117, 0
      %s120 = sadd.s32 %s119, 1
      %s121 = scalar_select %p118, %s119, %s120
      %p124 = pneg %p118
      %p125 = scmp.eq.s32.totalorder %s19, 7
      %p126 = por %p124, %p125
      %p127 = scmp.ne.s32.totalorder %s119, %s122
      %p128 = scmp.eq.s32.totalorder %s19, 0
      %p129 = por %p127, %p128
      %p130 = scmp.ne.s32.totalorder %s119, %s122
      %p131 = scmp.eq.s32.totalorder %s24, 7
      %p132 = por %p130, %p131
      %p133 = scmp.ne.s32.totalorder %s122, %s123
      %p134 = scmp.eq.s32.totalorder %s24, 0
      %p135 = por %p133, %p134
      %p136 = scmp.ne.s32.totalorder %s122, %s123
      %p137 = scmp.eq.s32.totalorder %s25, 7
      %p138 = por %p136, %p137
      %p140 = scmp.ne.s32.totalorder %s123, %s139
      %p141 = scmp.eq.s32.totalorder %s25, 0
      %p142 = por %p140, %p141
      %s143 = ssub.s32 %s27, %s34
      %p144 = scmp.eq.s32.totalorder %s143, 0
      %s146 = sadd.s32 %s145, 1
      %s147 = scalar_select %p144, %s145, %s146
      %p150 = pneg %p144
      %p151 = scmp.eq.s32.totalorder %s19, 7
      %p152 = por %p150, %p151
      %p153 = scmp.ne.s32.totalorder %s145, %s148
      %p154 = scmp.eq.s32.totalorder %s19, 0
      %p155 = por %p153, %p154
      %p156 = scmp.ne.s32.totalorder %s145, %s148
      %p157 = scmp.eq.s32.totalorder %s24, 7
      %p158 = por %p156, %p157
      %p159 = scmp.ne.s32.totalorder %s148, %s149
      %p160 = scmp.eq.s32.totalorder %s24, 0
      %p161 = por %p159, %p160
      %p162 = scmp.ne.s32.totalorder %s148, %s149
      %p163 = scmp.eq.s32.totalorder %s25, 7
      %p164 = por %p162, %p163
      %p166 = scmp.ne.s32.totalorder %s149, %s165
      %p167 = scmp.eq.s32.totalorder %s25, 0
      %p168 = por %p166, %p167
      %s169 = ssub.s32 %s27, %s34
      %p170 = scmp.eq.s32.totalorder %s169, 0
      %s172 = sadd.s32 %s171, 1
      %s173 = scalar_select %p170, %s171, %s172
      %p176 = pneg %p170
      %p177 = scmp.eq.s32.totalorder %s19, 7
      %p178 = por %p176, %p177
      %p179 = scmp.ne.s32.totalorder %s171, %s174
      %p180 = scmp.eq.s32.totalorder %s19, 0
      %p181 = por %p179, %p180
      %p182 = scmp.ne.s32.totalorder %s171, %s174
      %p183 = scmp.eq.s32.totalorder %s24, 7
      %p184 = por %p182, %p183
      %p185 = scmp.ne.s32.totalorder %s174, %s175
      %p186 = scmp.eq.s32.totalorder %s24, 0
      %p187 = por %p185, %p186
      %p188 = scmp.ne.s32.totalorder %s174, %s175
      %p189 = scmp.eq.s32.totalorder %s25, 7
      %p190 = por %p188, %p189
      %p192 = scmp.ne.s32.totalorder %s175, %s191
      %p193 = scmp.eq.s32.totalorder %s25, 0
      %p194 = por %p192, %p193
      %s195 = ssub.s32 %s27, %s34
      %p196 = scmp.eq.s32.totalorder %s195, 0
      %s198 = sadd.s32 %s197, 1
      %s199 = scalar_select %p196, %s197, %s198
      %p202 = pneg %p196
      %p203 = scmp.eq.s32.totalorder %s19, 7
      %p204 = por %p202, %p203
      %p205 = scmp.ne.s32.totalorder %s197, %s200
      %p206 = scmp.eq.s32.totalorder %s19, 0
      %p207 = por %p205, %p206
      %p208 = scmp.ne.s32.totalorder %s197, %s200
      %p209 = scmp.eq.s32.totalorder %s24, 7
      %p210 = por %p208, %p209
      %p211 = scmp.ne.s32.totalorder %s200, %s201
      %p212 = scmp.eq.s32.totalorder %s24, 0
      %p213 = por %p211, %p212
      %p214 = scmp.ne.s32.totalorder %s200, %s201
      %p215 = scmp.eq.s32.totalorder %s25, 7
      %p216 = por %p214, %p215
      %p218 = scmp.ne.s32.totalorder %s201, %s217
      %p219 = scmp.eq.s32.totalorder %s25, 0
      %p220 = por %p218, %p219
      %s221 = ssub.s32 %s27, %s34
      %p222 = scmp.eq.s32.totalorder %s221, 0
      %s224 = sadd.s32 %s223, 1
      %s225 = scalar_select %p222, %s223, %s224
      %p228 = pneg %p222
      %p229 = scmp.eq.s32.totalorder %s19, 7
      %p230 = por %p228, %p229
      %p231 = scmp.ne.s32.totalorder %s223, %s226
      %p232 = scmp.eq.s32.totalorder %s19, 0
      %p233 = por %p231, %p232
      %p234 = scmp.ne.s32.totalorder %s223, %s226
      %p235 = scmp.eq.s32.totalorder %s24, 7
      %p236 = por %p234, %p235
      %p237 = scmp.ne.s32.totalorder %s226, %s227
      %p238 = scmp.eq.s32.totalorder %s24, 0
      %p239 = por %p237, %p238
      %p240 = scmp.ne.s32.totalorder %s226, %s227
      %p241 = scmp.eq.s32.totalorder %s25, 7
      %p242 = por %p240, %p241
      %p244 = scmp.ne.s32.totalorder %s227, %s243
      %p245 = scmp.eq.s32.totalorder %s25, 0
      %p246 = por %p244, %p245
      %s247 = ssub.s32 %s27, %s34
      %p248 = scmp.eq.s32.totalorder %s247, 0
      %s250 = sadd.s32 %s249, 1
      %s251 = scalar_select %p248, %s249, %s250
      %p254 = pneg %p248
      %p255 = scmp.eq.s32.totalorder %s19, 7
      %p256 = por %p254, %p255
      %p257 = scmp.ne.s32.totalorder %s249, %s252
      %p258 = scmp.eq.s32.totalorder %s19, 0
      %p259 = por %p257, %p258
      %p260 = scmp.ne.s32.totalorder %s249, %s252
      %p261 = scmp.eq.s32.totalorder %s24, 7
      %p262 = por %p260, %p261
      %p263 = scmp.ne.s32.totalorder %s252, %s253
      %p264 = scmp.eq.s32.totalorder %s24, 0
      %p265 = por %p263, %p264
      %p266 = scmp.ne.s32.totalorder %s252, %s253
      %p267 = scmp.eq.s32.totalorder %s25, 7
      %p268 = por %p266, %p267
      %p270 = scmp.ne.s32.totalorder %s253, %s269
      %p271 = scmp.eq.s32.totalorder %s25, 0
      %p272 = por %p270, %p271
      %s274 = sadd.s32 %s273, 1
      %p277 = scmp.eq.s32.totalorder %s19, 7
      %p278 = scmp.ne.s32.totalorder %s273, %s275
      %p279 = scmp.eq.s32.totalorder %s19, 0
      %p280 = por %p278, %p279
      %p281 = scmp.ne.s32.totalorder %s273, %s275
      %p282 = scmp.eq.s32.totalorder %s24, 7
      %p283 = por %p281, %p282
      %p284 = scmp.ne.s32.totalorder %s275, %s276
      %p285 = scmp.eq.s32.totalorder %s24, 0
      %p286 = por %p284, %p285
      %p287 = scmp.ne.s32.totalorder %s275, %s276
      %p288 = scmp.eq.s32.totalorder %s25, 7
      %p289 = por %p287, %p288
      %p291 = scmp.ne.s32.totalorder %s276, %s290
      %p292 = scmp.eq.s32.totalorder %s25, 0
      %p293 = por %p291, %p292
      %s294 = ssub.s32 %s26, %s38
      %p295 = scmp.eq.s32.totalorder %s294, 0
      %s297 = sadd.s32 %s296, 1
      %s298 = scalar_select %p295, %s296, %s297
      %p301 = pneg %p295
      %p302 = scmp.eq.s32.totalorder %s19, 7
      %p303 = por %p301, %p302
      %p304 = scmp.ne.s32.totalorder %s296, %s299
      %p305 = scmp.eq.s32.totalorder %s19, 0
      %p306 = por %p304, %p305
      %p307 = scmp.ne.s32.totalorder %s296, %s299
      %p308 = scmp.eq.s32.totalorder %s24, 7
      %p309 = por %p307, %p308
      %p310 = scmp.ne.s32.totalorder %s299, %s300
      %p311 = scmp.eq.s32.totalorder %s24, 0
      %p312 = por %p310, %p311
      %p313 = scmp.ne.s32.totalorder %s299, %s300
      %p314 = scmp.eq.s32.totalorder %s25, 7
      %p315 = por %p313, %p314
      %p317 = scmp.ne.s32.totalorder %s300, %s316
      %p318 = scmp.eq.s32.totalorder %s25, 0
      %p319 = por %p317, %p318
      %p320 = scmp.le.s32.totalorder 1, %s19
      %p321 = scmp.lt.s32.totalorder %s19, 9
      %p322 = pnand %p320, %p321
      %p323 = pneg %p322
      // Predicated region
      $region9: #{tpu_custom_call.1} parent=5 // pred_check
        _
      $region10: #{tpu_custom_call.1} parent=5 // pred_check_branch
        %325 = sbr.rel (%p322) target = $region12
      $region11: #{tpu_custom_call.1} parent=5 // pred_region
        %s326 = ssub.s32 %s19, 1
        // Predicated region
        $region13: #{tpu_custom_call.1} parent=11 // pred_check
          %p327 = pneg %p286
        $region14: #{tpu_custom_call.1} parent=11 // pred_check_branch
          %329 = sbr.rel (%p327) target = $region16
        $region15: #{tpu_custom_call.1} parent=11 // pred_region
          _
        $region16: #{tpu_custom_call.1} parent=11 // pred_fallthru
          _
      $region12: #{tpu_custom_call.1} parent=5 // pred_fallthru
        _
      %p330 = scmp.lt.s32.totalorder %s19, 8
      // Predicated region
      $region17: #{tpu_custom_call.1} parent=5 // pred_check
        %p331 = pneg %p330
      $region18: #{tpu_custom_call.1} parent=5 // pred_check_branch
        %333 = sbr.rel (%p331) target = $region20
      $region19: #{tpu_custom_call.1} parent=5 // pred_region
        // Predicated region
        $region21: #{tpu_custom_call.1} parent=19 // pred_check
          %p334 = pneg %p51
        $region22: #{tpu_custom_call.1} parent=19 // pred_check_branch
          %336 = sbr.rel (%p334) target = $region24
        $region23: #{tpu_custom_call.1} parent=19 // pred_region
          %p337 = scmp.lt.s32.totalorder %s26, 1
          %s338 = scalar_select %p337, %s26, 1
          %s339 = smul.addr %s338, 8
          %s340 = scalar_lea.vmem %s0, %s339
        $region24: #{tpu_custom_call.1} parent=19 // pred_fallthru
          _
        // Predicated region
        $region25: #{tpu_custom_call.1} parent=19 // pred_check
          %p341 = pneg %p77
        $region26: #{tpu_custom_call.1} parent=19 // pred_check_branch
          %343 = sbr.rel (%p341) target = $region28
        $region27: #{tpu_custom_call.1} parent=19 // pred_region
          %p344 = scmp.lt.s32.totalorder %s26, 1
          %s345 = scalar_select %p344, %s26, 1
          %s346 = smul.addr %s345, 2
          %s347 = smul.addr %s346, 8
          %s348 = scalar_lea.vmem %s1, %s347
        $region28: #{tpu_custom_call.1} parent=19 // pred_fallthru
          _
        // Predicated region
        $region29: #{tpu_custom_call.1} parent=19 // pred_check
          %p349 = pneg %p103
        $region30: #{tpu_custom_call.1} parent=19 // pred_check_branch
          %351 = sbr.rel (%p349) target = $region32
        $region31: #{tpu_custom_call.1} parent=19 // pred_region
          %p352 = scmp.lt.s32.totalorder %s27, 3
          %s353 = scalar_select %p352, %s27, 3
          %s354 = smul.addr %s353, 4
          %s355 = smul.addr %s354, 8
          %s356 = scalar_lea.vmem %s2, %s355
        $region32: #{tpu_custom_call.1} parent=19 // pred_fallthru
          _
        // Predicated region
        $region33: #{tpu_custom_call.1} parent=19 // pred_check
          %p357 = pneg %p129
        $region34: #{tpu_custom_call.1} parent=19 // pred_check_branch
          %359 = sbr.rel (%p357) target = $region36
        $region35: #{tpu_custom_call.1} parent=19 // pred_region
          %p360 = scmp.lt.s32.totalorder %s27, 3
          %s361 = scalar_select %p360, %s27, 3
          %s362 = scalar_lea.vmem %s3, %s361
        $region36: #{tpu_custom_call.1} parent=19 // pred_fallthru
          _
        // Predicated region
        $region37: #{tpu_custom_call.1} parent=19 // pred_check
          %p363 = pneg %p155
        $region38: #{tpu_custom_call.1} parent=19 // pred_check_branch
          %365 = sbr.rel (%p363) target = $region40
        $region39: #{tpu_custom_call.1} parent=19 // pred_region
          %p366 = scmp.lt.s32.totalorder %s27, 3
          %s367 = scalar_select %p366, %s27, 3
          %s368 = smul.addr %s367, 6
          %s369 = smul.addr %s368, 8
          %s370 = scalar_lea.vmem %s4, %s369
        $region40: #{tpu_custom_call.1} parent=19 // pred_fallthru
          _
        // Predicated region
        $region41: #{tpu_custom_call.1} parent=19 // pred_check
          %p371 = pneg %p181
        $region42: #{tpu_custom_call.1} parent=19 // pred_check_branch
          %373 = sbr.rel (%p371) target = $region44
        $region43: #{tpu_custom_call.1} parent=19 // pred_region
          %p374 = scmp.lt.s32.totalorder %s27, 3
          %s375 = scalar_select %p374, %s27, 3
          %s376 = scalar_lea.vmem %s5, %s375
        $region44: #{tpu_custom_call.1} parent=19 // pred_fallthru
          _
        // Predicated region
        $region45: #{tpu_custom_call.1} parent=19 // pred_check
          %p377 = pneg %p207
        $region46: #{tpu_custom_call.1} parent=19 // pred_check_branch
          %379 = sbr.rel (%p377) target = $region48
        $region47: #{tpu_custom_call.1} parent=19 // pred_region
          %p380 = scmp.lt.s32.totalorder %s27, 3
          %s381 = scalar_select %p380, %s27, 3
          %s382 = smul.addr %s381, 6
          %s383 = smul.addr %s382, 8
          %s384 = scalar_lea.vmem %s6, %s383
        $region48: #{tpu_custom_call.1} parent=19 // pred_fallthru
          _
        // Predicated region
        $region49: #{tpu_custom_call.1} parent=19 // pred_check
          %p385 = pneg %p233
        $region50: #{tpu_custom_call.1} parent=19 // pred_check_branch
          %387 = sbr.rel (%p385) target = $region52
        $region51: #{tpu_custom_call.1} parent=19 // pred_region
          %p388 = scmp.lt.s32.totalorder %s27, 3
          %s389 = scalar_select %p388, %s27, 3
          %s390 = scalar_lea.vmem %s7, %s389
        $region52: #{tpu_custom_call.1} parent=19 // pred_fallthru
          _
        // Predicated region
        $region53: #{tpu_custom_call.1} parent=19 // pred_check
          %p391 = pneg %p259
        $region54: #{tpu_custom_call.1} parent=19 // pred_check_branch
          %393 = sbr.rel (%p391) target = $region56
        $region55: #{tpu_custom_call.1} parent=19 // pred_region
          %p394 = scmp.lt.s32.totalorder %s27, 3
          %s395 = scalar_select %p394, %s27, 3
          %s396 = smul.addr %s395, 8
          %s397 = scalar_lea.vmem %s8, %s396
        $region56: #{tpu_custom_call.1} parent=19 // pred_fallthru
          _
      $region20: #{tpu_custom_call.1} parent=5 // pred_fallthru
        _
      %p398 = scmp.le.s32.totalorder 1, %s19
      %p399 = scmp.lt.s32.totalorder %s19, 9
      %p400 = pnand %p398, %p399
      %p401 = pneg %p400
      // Predicated region
      $region57: #{tpu_custom_call.1} parent=5 // pred_check
        _
      $region58: #{tpu_custom_call.1} parent=5 // pred_check_branch
        %403 = sbr.rel (%p400) target = $region60
      $region59: #{tpu_custom_call.1} parent=5 // pred_region
        %s404 = ssub.s32 %s19, 1
        %p405 = scmp.lt.s32.totalorder %s28, 1
        %s406 = scalar_select %p405, %s28, 1
        %s407 = smul.addr %s406, 8
        %s408 = scalar_lea.vmem %s0, %s407
        %p409 = pneg %p57
        %p410 = pneg %p54
        %p411 = scmp.lt.s32.totalorder %s28, 1
        %s412 = scalar_select %p411, %s28, 1
        %s413 = smul.addr %s412, 2
        %s414 = smul.addr %s413, 8
        %s415 = scalar_lea.vmem %s1, %s414
        %p416 = pneg %p83
        %p417 = pneg %p80
        %p418 = scmp.lt.s32.totalorder %s29, 3
        %s419 = scalar_select %p418, %s29, 3
        %s420 = smul.addr %s419, 4
        %s421 = smul.addr %s420, 8
        %s422 = scalar_lea.vmem %s2, %s421
        %p423 = pneg %p109
        %p424 = pneg %p106
        %p425 = scmp.lt.s32.totalorder %s29, 3
        %s426 = scalar_select %p425, %s29, 3
        %s427 = scalar_lea.vmem %s3, %s426
        %p428 = pneg %p135
        %p429 = pneg %p132
        %p430 = scmp.lt.s32.totalorder %s29, 3
        %s431 = scalar_select %p430, %s29, 3
        %s432 = smul.addr %s431, 6
        %s433 = smul.addr %s432, 8
        %s434 = scalar_lea.vmem %s4, %s433
        %p435 = pneg %p161
        %p436 = pneg %p158
        %p437 = scmp.lt.s32.totalorder %s29, 3
        %s438 = scalar_select %p437, %s29, 3
        %s439 = scalar_lea.vmem %s5, %s438
        %p440 = pneg %p187
        %p441 = pneg %p184
        %p442 = scmp.lt.s32.totalorder %s29, 3
        %s443 = scalar_select %p442, %s29, 3
        %s444 = smul.addr %s443, 6
        %s445 = smul.addr %s444, 8
        %s446 = scalar_lea.vmem %s6, %s445
        %p447 = pneg %p213
        %p448 = pneg %p210
        %p449 = scmp.lt.s32.totalorder %s29, 3
        %s450 = scalar_select %p449, %s29, 3
        %s451 = scalar_lea.vmem %s7, %s450
        %p452 = pneg %p239
        %p453 = pneg %p236
        %p454 = scmp.lt.s32.totalorder %s29, 3
        %s455 = scalar_select %p454, %s29, 3
        %s456 = smul.addr %s455, 8
        %s457 = scalar_lea.vmem %s8, %s456
        %p458 = pneg %p265
        %p459 = pneg %p262
        %p460 = pneg %p286
        %p461 = pneg %p283
        %p462 = pneg %p312
        %p463 = pneg %p309
        %s464 = sand.u32 %s299, 1
        %s465 = scalar_lea.sflag [#allocation4], %s464
        %s466 = sand.u32 %s299, 1
        %s467 = smul.addr %s466, 8
        %s468 = scalar_lea.vmem [#allocation3], %s467
        %p469 = scmp.lt.s32.totalorder %s28, 1
        %s470 = scalar_select %p469, %s28, 1
        %s471 = smul.addr %s470, 8
        %s472 = scalar_lea.vmem %s0, %s471
        %p473 = scmp.lt.s32.totalorder %s28, 1
        %s474 = scalar_select %p473, %s28, 1
        %s475 = smul.addr %s474, 2
        %s476 = smul.addr %s475, 8
        %s477 = scalar_lea.vmem %s1, %s476
        %p478 = scmp.lt.s32.totalorder %s29, 3
        %s479 = scalar_select %p478, %s29, 3
        %s480 = smul.addr %s479, 4
        %s481 = smul.addr %s480, 8
        %s482 = scalar_lea.vmem %s2, %s481
        %p483 = scmp.lt.s32.totalorder %s29, 3
        %s484 = scalar_select %p483, %s29, 3
        %s485 = scalar_lea.vmem %s3, %s484
        %p486 = scmp.lt.s32.totalorder %s29, 3
        %s487 = scalar_select %p486, %s29, 3
        %s488 = smul.addr %s487, 6
        %s489 = smul.addr %s488, 8
        %s490 = scalar_lea.vmem %s4, %s489
        %p491 = scmp.lt.s32.totalorder %s29, 3
        %s492 = scalar_select %p491, %s29, 3
        %s493 = scalar_lea.vmem %s5, %s492
        %p494 = scmp.lt.s32.totalorder %s29, 3
        %s495 = scalar_select %p494, %s29, 3
        %s496 = smul.addr %s495, 6
        %s497 = smul.addr %s496, 8
        %s498 = scalar_lea.vmem %s6, %s497
        %p499 = scmp.lt.s32.totalorder %s29, 3
        %s500 = scalar_select %p499, %s29, 3
        %s501 = scalar_lea.vmem %s7, %s500
        %p502 = scmp.lt.s32.totalorder %s29, 3
        %s503 = scalar_select %p502, %s29, 3
        %s504 = smul.addr %s503, 8
        %s505 = scalar_lea.vmem %s8, %s504
        %p506 = scmp.eq.s32.totalorder %s29, 0
        // Predicated region
        $region61: #{tpu_custom_call.1} parent=59 // pred_check
          %p507 = pneg %p506
        $region62: #{tpu_custom_call.1} parent=59 // pred_check_branch
          %509 = sbr.rel (%p507) target = $region64
        $region63: #{tpu_custom_call.1} parent=59 // pred_region
          %vm510 = vcmask 261120
          %511 = vst.msk [vmem:[#allocation2] sm:$0xff] %vm510, 0.0
        $region64: #{tpu_custom_call.1} parent=59 // pred_fallthru
          _
        %v512 = vld [vmem:[%s472] sm:$0xff]
        %v513 = vld [vmem:[%s477] sm:$0xff]
        %v514 = vld [vmem:[%s477 + $0x8] sm:$0xff]
        %v515 = vld [vmem:[%s482] sm:$0xff]
        %v516 = vld [vmem:[%s482 + $0x8] sm:$0xff]
        %v517 = vld [vmem:[%s482 + $0x10] sm:$0xff]
        %v518 = vld [vmem:[%s482 + $0x18] sm:$0xff]
        %v519 = vld [vmem:[%s490] sm:$0xff]
        %v520 = vld [vmem:[%s490 + $0x8] sm:$0xff]
        %v521 = vld [vmem:[%s490 + $0x10] sm:$0xff]
        %v522 = vld [vmem:[%s490 + $0x18] sm:$0xff]
        %v523 = vld [vmem:[%s490 + $0x20] sm:$0xff]
        %v524 = vld [vmem:[%s490 + $0x28] sm:$0xff]
        %v525 = vld [vmem:[%s498] sm:$0xff]
        %v526 = vld [vmem:[%s498 + $0x8] sm:$0xff]
        %v527 = vld [vmem:[%s498 + $0x10] sm:$0xff]
        %v528 = vld [vmem:[%s498 + $0x18] sm:$0xff]
        %v529 = vld [vmem:[%s498 + $0x20] sm:$0xff]
        %v530 = vld [vmem:[%s498 + $0x28] sm:$0xff]
        %v531 = vld [vmem:[%s505] sm:$0xff]
        %v532 = vld [vmem:[%s485] sm:$0x1]
        %v534 = vlaneseq
        %v535 = vshrl.u32 %v534, 7
        %v536 = vsub.s32 0, %v535
        %v537 = vrot.slane %v532, %v536
        %vm539 = vcmask 261120
        %v541 = vsel %vm539, %v512, 0
        %543 = vmatprep.subr.mxu0 0.0
        %544 = vmatpush1.msra.mxu0 %v515
        %545 = vmatprep.subr.mxu0 0.0
        %546 = vmatpush1.msra.mxu0 %v516
        %547 = vmatprep.subr.mxu0 0.0
        %548 = vmatpush1.msra.mxu0 %v517
        %549 = vmatprep.subr.mxu0 0.0
        %550 = vmatpush1.msra.mxu0 %v518
        %551 = vmatprep.subr.mxu0 0.0
        %552 = vmatpush1.msra.mxu0 0.0
        %553 = vmatprep.subr.mxu0 0.0
        %554 = vmatpush1.msra.mxu0 0.0
        %555 = vmatprep.subr.mxu0 0.0
        %556 = vmatpush1.msra.mxu0 0.0
        %557 = vmatprep.subr.mxu0 0.0
        %558 = vmatpush1.msra.mxu0 0.0
        %559 = vmatprep.subr.mxu0 0.0
        %560 = vmatpush1.msra.mxu0 0.0
        %561 = vmatprep.subr.mxu0 0.0
        %562 = vmatpush1.msra.mxu0 0.0
        %563 = vmatprep.subr.mxu0 0.0
        %564 = vmatpush1.msra.mxu0 0.0
        %565 = vmatprep.subr.mxu0 0.0
        %566 = vmatpush1.msra.mxu0 0.0
        %567 = vmatprep.subr.mxu0 0.0
        %568 = vmatpush1.msra.mxu0 0.0
        %569 = vmatprep.subr.mxu0 0.0
        %570 = vmatpush1.msra.mxu0 0.0
        %571 = vmatprep.subr.mxu0 0.0
        %572 = vmatpush1.msra.mxu0 0.0
        %573 = vmatprep.subr.mxu0 0.0
        %574 = vmatpush1.msra.mxu0 0.0
        %575 = vmatprep.subr.mxu0 0.0
        %576 = vmatpush1.msra.mxu0 0.0
        %577 = vmatprep.subr.mxu0 0.0
        %578 = vmatpush1.msra.mxu0 0.0
        %579 = vmatprep.subr.mxu0 0.0
        %580 = vmatpush1.msra.mxu0 0.0
        %581 = vmatprep.subr.mxu0 0.0
        %582 = vmatpush1.msra.mxu0 0.0
        %583 = vmatprep.subr.mxu0 0.0
        %584 = vmatpush1.msra.mxu0 0.0
        %585 = vmatprep.subr.mxu0 0.0
        %586 = vmatpush1.msra.mxu0 0.0
        %587 = vmatprep.subr.mxu0 0.0
        %588 = vmatpush1.msra.mxu0 0.0
        %589 = vmatprep.subr.mxu0 0.0
        %590 = vmatpush1.msra.mxu0 0.0
        %591 = vmatprep.subr.mxu0 0.0
        %592 = vmatpush1.msra.mxu0 0.0
        %593 = vmatprep.subr.mxu0 0.0
        %594 = vmatpush1.msra.mxu0 0.0
        %595 = vmatprep.subr.mxu0 0.0
        %596 = vmatpush1.msra.mxu0 0.0
        %597 = vmatprep.subr.mxu0 0.0
        %598 = vmatpush1.msra.mxu0 0.0
        %599 = vmatprep.subr.mxu0 0.0
        %600 = vmatpush1.msra.mxu0 0.0
        %601 = vmatprep.subr.mxu0 0.0
        %602 = vmatpush1.msra.mxu0 0.0
        %603 = vmatprep.subr.mxu0 0.0
        %604 = vmatpush1.msra.mxu0 0.0
        %605 = vmatprep.subr.mxu0 0.0
        %606 = vmatpush1.msra.mxu0 0.0
        %607 = vmatprep.mubr.f32.mxu0 0.0
        %608 = vmatmul.mubr.f32.gmra.mrb[0].mxu0 %v541
        %v609 = vpop.f32.mrb[0].mxu0
        %v610 = vadd.f32 %v537, %v609
        %v611 = vpop.f32.mrb[0].mxu0
        %612 = vdwg.mxu0
        %v613 = vmul.f32 %v610, 0.35355338
        %v614 = vld [vmem:[%s493] sm:$0x1]
        %v616 = vlaneseq
        %v617 = vshrl.u32 %v616, 7
        %v618 = vsub.s32 0, %v617
        %v619 = vrot.slane %v614, %v618
        %vm621 = vcmask 392192
        %v623 = vsel %vm621, %v513, 0
        %v626 = vsel %vm621, %v514, 0
        %628 = vmatprep.subr.mxu0 0.0
        %629 = vmatpush1.msra.mxu0 %v519
        %630 = vmatprep.subr.mxu0 0.0
        %631 = vmatpush1.msra.mxu0 %v520
        %632 = vmatprep.subr.mxu0 0.0
        %633 = vmatpush1.msra.mxu0 %v521
        %634 = vmatprep.subr.mxu0 0.0
        %635 = vmatpush1.msra.mxu0 %v522
        %636 = vmatprep.subr.mxu0 0.0
        %637 = vmatpush1.msra.mxu0 %v523
        %638 = vmatprep.subr.mxu0 0.0
        %639 = vmatpush1.msra.mxu0 %v524
        %640 = vmatprep.subr.mxu0 0.0
        %641 = vmatpush1.msra.mxu0 0.0
        %642 = vmatprep.subr.mxu0 0.0
        %643 = vmatpush1.msra.mxu0 0.0
        %644 = vmatprep.subr.mxu0 0.0
        %645 = vmatpush1.msra.mxu0 0.0
        %646 = vmatprep.subr.mxu0 0.0
        %647 = vmatpush1.msra.mxu0 0.0
        %648 = vmatprep.subr.mxu0 0.0
        %649 = vmatpush1.msra.mxu0 0.0
        %650 = vmatprep.subr.mxu0 0.0
        %651 = vmatpush1.msra.mxu0 0.0
        %652 = vmatprep.subr.mxu0 0.0
        %653 = vmatpush1.msra.mxu0 0.0
        %654 = vmatprep.subr.mxu0 0.0
        %655 = vmatpush1.msra.mxu0 0.0
        %656 = vmatprep.subr.mxu0 0.0
        %657 = vmatpush1.msra.mxu0 0.0
        %658 = vmatprep.subr.mxu0 0.0
        %659 = vmatpush1.msra.mxu0 0.0
        %660 = vmatprep.subr.mxu0 0.0
        %661 = vmatpush1.msra.mxu0 0.0
        %662 = vmatprep.subr.mxu0 0.0
        %663 = vmatpush1.msra.mxu0 0.0
        %664 = vmatprep.subr.mxu0 0.0
        %665 = vmatpush1.msra.mxu0 0.0
        %666 = vmatprep.subr.mxu0 0.0
        %667 = vmatpush1.msra.mxu0 0.0
        %668 = vmatprep.subr.mxu0 0.0
        %669 = vmatpush1.msra.mxu0 0.0
        %670 = vmatprep.subr.mxu0 0.0
        %671 = vmatpush1.msra.mxu0 0.0
        %672 = vmatprep.subr.mxu0 0.0
        %673 = vmatpush1.msra.mxu0 0.0
        %674 = vmatprep.subr.mxu0 0.0
        %675 = vmatpush1.msra.mxu0 0.0
        %676 = vmatprep.subr.mxu0 0.0
        %677 = vmatpush1.msra.mxu0 0.0
        %678 = vmatprep.subr.mxu0 0.0
        %679 = vmatpush1.msra.mxu0 0.0
        %680 = vmatprep.subr.mxu0 0.0
        %681 = vmatpush1.msra.mxu0 0.0
        %682 = vmatprep.subr.mxu0 0.0
        %683 = vmatpush1.msra.mxu0 0.0
        %684 = vmatprep.subr.mxu0 0.0
        %685 = vmatpush1.msra.mxu0 0.0
        %686 = vmatprep.subr.mxu0 0.0
        %687 = vmatpush1.msra.mxu0 0.0
        %688 = vmatprep.subr.mxu0 0.0
        %689 = vmatpush1.msra.mxu0 0.0
        %690 = vmatprep.subr.mxu0 0.0
        %691 = vmatpush1.msra.mxu0 0.0
        %692 = vmatprep.mubr.f32.mxu0 0.0
        %693 = vmatmul.mubr.f32.gmra.mrb[0].mxu0 %v623
        %v694 = vpop.f32.mrb[0].mxu0
        %v695 = vadd.f32 %v619, %v694
        %v696 = vpop.f32.mrb[0].mxu0
        %697 = vmatprep.mubr.f32.mxu0 0.0
        %698 = vmatmul.mubr.f32.gmra.mrb[0].mxu0 %v626
        %v699 = vpop.f32.mrb[0].mxu0
        %v700 = vadd.f32 %v619, %v699
        %v701 = vpop.f32.mrb[0].mxu0
        %702 = vdwg.mxu0
        %v703 = vld [vmem:[%s501] sm:$0x1]
        %v705 = vlaneseq
        %v706 = vshrl.u32 %v705, 7
        %v707 = vsub.s32 0, %v706
        %v708 = vrot.slane %v703, %v707
        %710 = vmatprep.subr.mxu0 0.0
        %711 = vmatpush1.msra.mxu0 %v525
        %712 = vmatprep.subr.mxu0 0.0
        %713 = vmatpush1.msra.mxu0 %v526
        %714 = vmatprep.subr.mxu0 0.0
        %715 = vmatpush1.msra.mxu0 %v527
        %716 = vmatprep.subr.mxu0 0.0
        %717 = vmatpush1.msra.mxu0 %v528
        %718 = vmatprep.subr.mxu0 0.0
        %719 = vmatpush1.msra.mxu0 %v529
        %720 = vmatprep.subr.mxu0 0.0
        %721 = vmatpush1.msra.mxu0 %v530
        %722 = vmatprep.subr.mxu0 0.0
        %723 = vmatpush1.msra.mxu0 0.0
        %724 = vmatprep.subr.mxu0 0.0
        %725 = vmatpush1.msra.mxu0 0.0
        %726 = vmatprep.subr.mxu0 0.0
        %727 = vmatpush1.msra.mxu0 0.0
        %728 = vmatprep.subr.mxu0 0.0
        %729 = vmatpush1.msra.mxu0 0.0
        %730 = vmatprep.subr.mxu0 0.0
        %731 = vmatpush1.msra.mxu0 0.0
        %732 = vmatprep.subr.mxu0 0.0
        %733 = vmatpush1.msra.mxu0 0.0
        %734 = vmatprep.subr.mxu0 0.0
        %735 = vmatpush1.msra.mxu0 0.0
        %736 = vmatprep.subr.mxu0 0.0
        %737 = vmatpush1.msra.mxu0 0.0
        %738 = vmatprep.subr.mxu0 0.0
        %739 = vmatpush1.msra.mxu0 0.0
        %740 = vmatprep.subr.mxu0 0.0
        %741 = vmatpush1.msra.mxu0 0.0
        %742 = vmatprep.subr.mxu0 0.0
        %743 = vmatpush1.msra.mxu0 0.0
        %744 = vmatprep.subr.mxu0 0.0
        %745 = vmatpush1.msra.mxu0 0.0
        %746 = vmatprep.subr.mxu0 0.0
        %747 = vmatpush1.msra.mxu0 0.0
        %748 = vmatprep.subr.mxu0 0.0
        %749 = vmatpush1.msra.mxu0 0.0
        %750 = vmatprep.subr.mxu0 0.0
        %751 = vmatpush1.msra.mxu0 0.0
        %752 = vmatprep.subr.mxu0 0.0
        %753 = vmatpush1.msra.mxu0 0.0
        %754 = vmatprep.subr.mxu0 0.0
        %755 = vmatpush1.msra.mxu0 0.0
        %756 = vmatprep.subr.mxu0 0.0
        %757 = vmatpush1.msra.mxu0 0.0
        %758 = vmatprep.subr.mxu0 0.0
        %759 = vmatpush1.msra.mxu0 0.0
        %760 = vmatprep.subr.mxu0 0.0
        %761 = vmatpush1.msra.mxu0 0.0
        %762 = vmatprep.subr.mxu0 0.0
        %763 = vmatpush1.msra.mxu0 0.0
        %764 = vmatprep.subr.mxu0 0.0
        %765 = vmatpush1.msra.mxu0 0.0
        %766 = vmatprep.subr.mxu0 0.0
        %767 = vmatpush1.msra.mxu0 0.0
        %768 = vmatprep.subr.mxu0 0.0
        %769 = vmatpush1.msra.mxu0 0.0
        %770 = vmatprep.subr.mxu0 0.0
        %771 = vmatpush1.msra.mxu0 0.0
        %772 = vmatprep.subr.mxu0 0.0
        %773 = vmatpush1.msra.mxu0 0.0
        %774 = vmatprep.mubr.f32.mxu0 0.0
        %775 = vmatmul.mubr.f32.gmra.mrb[0].mxu0 %v623
        %v776 = vpop.f32.mrb[0].mxu0
        %v777 = vadd.f32 %v708, %v776
        %v778 = vpop.f32.mrb[0].mxu0
        %779 = vmatprep.mubr.f32.mxu0 0.0
        %780 = vmatmul.mubr.f32.gmra.mrb[0].mxu0 %v626
        %v781 = vpop.f32.mrb[0].mxu0
        %v782 = vadd.f32 %v708, %v781
        %v783 = vpop.f32.mrb[0].mxu0
        %784 = vdwg.mxu0
        %vm785 = vcmask 64512
        %v787 = vsel %vm785, %v613, 0
        %v790 = vsel %vm785, %v695, 0
        %v793 = vsel %vm785, %v700, 0
        %795 = vmatprep.subr.mxu0 0.0
        %796 = vmatpush1.xpose.msra.mxu0 %v790
        %797 = vmatprep.subr.mxu0 0.0
        %798 = vmatpush1.xpose.msra.mxu0 %v793
        %799 = vmatprep.subr.mxu0 0.0
        %800 = vmatpush1.xpose.msra.mxu0 0.0
        %801 = vmatprep.subr.mxu0 0.0
        %802 = vmatpush1.xpose.msra.mxu0 0.0
        %803 = vmatprep.subr.mxu0 0.0
        %804 = vmatpush1.xpose.msra.mxu0 0.0
        %805 = vmatprep.subr.mxu0 0.0
        %806 = vmatpush1.xpose.msra.mxu0 0.0
        %807 = vmatprep.subr.mxu0 0.0
        %808 = vmatpush1.xpose.msra.mxu0 0.0
        %809 = vmatprep.subr.mxu0 0.0
        %810 = vmatpush1.xpose.msra.mxu0 0.0
        %811 = vmatprep.subr.mxu0 0.0
        %812 = vmatpush1.xpose.msra.mxu0 0.0
        %813 = vmatprep.subr.mxu0 0.0
        %814 = vmatpush1.xpose.msra.mxu0 0.0
        %815 = vmatprep.subr.mxu0 0.0
        %816 = vmatpush1.xpose.msra.mxu0 0.0
        %817 = vmatprep.subr.mxu0 0.0
        %818 = vmatpush1.xpose.msra.mxu0 0.0
        %819 = vmatprep.subr.mxu0 0.0
        %820 = vmatpush1.xpose.msra.mxu0 0.0
        %821 = vmatprep.subr.mxu0 0.0
        %822 = vmatpush1.xpose.msra.mxu0 0.0
        %823 = vmatprep.subr.mxu0 0.0
        %824 = vmatpush1.xpose.msra.mxu0 0.0
        %825 = vmatprep.subr.mxu0 0.0
        %826 = vmatpush1.xpose.msra.mxu0 0.0
        %827 = vmatprep.subr.mxu0 0.0
        %828 = vmatpush1.xpose.msra.mxu0 0.0
        %829 = vmatprep.subr.mxu0 0.0
        %830 = vmatpush1.xpose.msra.mxu0 0.0
        %831 = vmatprep.subr.mxu0 0.0
        %832 = vmatpush1.xpose.msra.mxu0 0.0
        %833 = vmatprep.subr.mxu0 0.0
        %834 = vmatpush1.xpose.msra.mxu0 0.0
        %835 = vmatprep.subr.mxu0 0.0
        %836 = vmatpush1.xpose.msra.mxu0 0.0
        %837 = vmatprep.subr.mxu0 0.0
        %838 = vmatpush1.xpose.msra.mxu0 0.0
        %839 = vmatprep.subr.mxu0 0.0
        %840 = vmatpush1.xpose.msra.mxu0 0.0
        %841 = vmatprep.subr.mxu0 0.0
        %842 = vmatpush1.xpose.msra.mxu0 0.0
        %843 = vmatprep.subr.mxu0 0.0
        %844 = vmatpush1.xpose.msra.mxu0 0.0
        %845 = vmatprep.subr.mxu0 0.0
        %846 = vmatpush1.xpose.msra.mxu0 0.0
        %847 = vmatprep.subr.mxu0 0.0
        %848 = vmatpush1.xpose.msra.mxu0 0.0
        %849 = vmatprep.subr.mxu0 0.0
        %850 = vmatpush1.xpose.msra.mxu0 0.0
        %851 = vmatprep.subr.mxu0 0.0
        %852 = vmatpush1.xpose.msra.mxu0 0.0
        %853 = vmatprep.subr.mxu0 0.0
        %854 = vmatpush1.xpose.msra.mxu0 0.0
        %855 = vmatprep.subr.mxu0 0.0
        %856 = vmatpush1.xpose.msra.mxu0 0.0
        %857 = vmatprep.subr.mxu0 0.0
        %858 = vmatpush1.xpose.msra.mxu0 0.0
        %859 = vmatprep.mubr.f32.mxu0 0.0
        %860 = vmatmul.mubr.f32.gmra.mrb[0].mxu0 %v787
        %v861 = vpop.f32.mrb[0].mxu0
        %v862 = vadd.f32 0.0, %v861
        %v863 = vpop.f32.mrb[0].mxu0
        %864 = vdwg.mxu0
        %vm865 = vcmask 130048
        %v866 = vsel %vm865, %v862, -inf
        %867 = vmax.xlane.f32.xlu0 %v866
        %v868 = vpop.xlane.xlu0 %867
        %v869 = vsub.f32 %v862, %v868
        %v870 = vmul.f32 %v869, 1.442695
        %v871 = vpow.pop %v870
        %v872 = vsel %vm865, %v871, 0.0
        %873 = vadd.xlane.f32.xlu0 %v872
        %v874 = vpop.xlane.xlu0 %873
        %v876 = vsel %vm865, %v871, 0
        %878 = vmatprep.subr.mxu0 0.0
        %879 = vmatpush1.msra.mxu0 %v777
        %880 = vmatprep.subr.mxu0 0.0
        %881 = vmatpush1.msra.mxu0 %v782
        %882 = vmatprep.subr.mxu0 0.0
        %883 = vmatpush1.msra.mxu0 0.0
        %884 = vmatprep.subr.mxu0 0.0
        %885 = vmatpush1.msra.mxu0 0.0
        %886 = vmatprep.subr.mxu0 0.0
        %887 = vmatpush1.msra.mxu0 0.0
        %888 = vmatprep.subr.mxu0 0.0
        %889 = vmatpush1.msra.mxu0 0.0
        %890 = vmatprep.subr.mxu0 0.0
        %891 = vmatpush1.msra.mxu0 0.0
        %892 = vmatprep.subr.mxu0 0.0
        %893 = vmatpush1.msra.mxu0 0.0
        %894 = vmatprep.subr.mxu0 0.0
        %895 = vmatpush1.msra.mxu0 0.0
        %896 = vmatprep.subr.mxu0 0.0
        %897 = vmatpush1.msra.mxu0 0.0
        %898 = vmatprep.subr.mxu0 0.0
        %899 = vmatpush1.msra.mxu0 0.0
        %900 = vmatprep.subr.mxu0 0.0
        %901 = vmatpush1.msra.mxu0 0.0
        %902 = vmatprep.subr.mxu0 0.0
        %903 = vmatpush1.msra.mxu0 0.0
        %904 = vmatprep.subr.mxu0 0.0
        %905 = vmatpush1.msra.mxu0 0.0
        %906 = vmatprep.subr.mxu0 0.0
        %907 = vmatpush1.msra.mxu0 0.0
        %908 = vmatprep.subr.mxu0 0.0
        %909 = vmatpush1.msra.mxu0 0.0
        %910 = vmatprep.subr.mxu0 0.0
        %911 = vmatpush1.msra.mxu0 0.0
        %912 = vmatprep.subr.mxu0 0.0
        %913 = vmatpush1.msra.mxu0 0.0
        %914 = vmatprep.subr.mxu0 0.0
        %915 = vmatpush1.msra.mxu0 0.0
        %916 = vmatprep.subr.mxu0 0.0
        %917 = vmatpush1.msra.mxu0 0.0
        %918 = vmatprep.subr.mxu0 0.0
        %919 = vmatpush1.msra.mxu0 0.0
        %920 = vmatprep.subr.mxu0 0.0
        %921 = vmatpush1.msra.mxu0 0.0
        %922 = vmatprep.subr.mxu0 0.0
        %923 = vmatpush1.msra.mxu0 0.0
        %924 = vmatprep.subr.mxu0 0.0
        %925 = vmatpush1.msra.mxu0 0.0
        %926 = vmatprep.subr.mxu0 0.0
        %927 = vmatpush1.msra.mxu0 0.0
        %928 = vmatprep.subr.mxu0 0.0
        %929 = vmatpush1.msra.mxu0 0.0
        %930 = vmatprep.subr.mxu0 0.0
        %931 = vmatpush1.msra.mxu0 0.0
        %932 = vmatprep.subr.mxu0 0.0
        %933 = vmatpush1.msra.mxu0 0.0
        %934 = vmatprep.subr.mxu0 0.0
        %935 = vmatpush1.msra.mxu0 0.0
        %936 = vmatprep.subr.mxu0 0.0
        %937 = vmatpush1.msra.mxu0 0.0
        %938 = vmatprep.subr.mxu0 0.0
        %939 = vmatpush1.msra.mxu0 0.0
        %940 = vmatprep.subr.mxu0 0.0
        %941 = vmatpush1.msra.mxu0 0.0
        %942 = vmatprep.mubr.f32.mxu0 0.0
        %943 = vmatmul.mubr.f32.gmra.mrb[0].mxu0 %v876
        %v944 = vpop.f32.mrb[0].mxu0
        %v945 = vadd.f32 0.0, %v944
        %v946 = vpop.f32.mrb[0].mxu0
        %947 = vdwg.mxu0
        %v948 = vrcp.pop %v874
        %v949 = vmul.f32 %v945, %v948
        %v950 = vld [vmem:[#allocation2] sm:$0xff]
        %v952 = vsel %vm785, %v949, 0
        %954 = vmatprep.subr.mxu0 0.0
        %955 = vmatpush1.msra.mxu0 %v531
        %956 = vmatprep.subr.mxu0 0.0
        %957 = vmatpush1.msra.mxu0 0.0
        %958 = vmatprep.subr.mxu0 0.0
        %959 = vmatpush1.msra.mxu0 0.0
        %960 = vmatprep.subr.mxu0 0.0
        %961 = vmatpush1.msra.mxu0 0.0
        %962 = vmatprep.subr.mxu0 0.0
        %963 = vmatpush1.msra.mxu0 0.0
        %964 = vmatprep.subr.mxu0 0.0
        %965 = vmatpush1.msra.mxu0 0.0
        %966 = vmatprep.subr.mxu0 0.0
        %967 = vmatpush1.msra.mxu0 0.0
        %968 = vmatprep.subr.mxu0 0.0
        %969 = vmatpush1.msra.mxu0 0.0
        %970 = vmatprep.subr.mxu0 0.0
        %971 = vmatpush1.msra.mxu0 0.0
        %972 = vmatprep.subr.mxu0 0.0
        %973 = vmatpush1.msra.mxu0 0.0
        %974 = vmatprep.subr.mxu0 0.0
        %975 = vmatpush1.msra.mxu0 0.0
        %976 = vmatprep.subr.mxu0 0.0
        %977 = vmatpush1.msra.mxu0 0.0
        %978 = vmatprep.subr.mxu0 0.0
        %979 = vmatpush1.msra.mxu0 0.0
        %980 = vmatprep.subr.mxu0 0.0
        %981 = vmatpush1.msra.mxu0 0.0
        %982 = vmatprep.subr.mxu0 0.0
        %983 = vmatpush1.msra.mxu0 0.0
        %984 = vmatprep.subr.mxu0 0.0
        %985 = vmatpush1.msra.mxu0 0.0
        %986 = vmatprep.subr.mxu0 0.0
        %987 = vmatpush1.msra.mxu0 0.0
        %988 = vmatprep.subr.mxu0 0.0
        %989 = vmatpush1.msra.mxu0 0.0
        %990 = vmatprep.subr.mxu0 0.0
        %991 = vmatpush1.msra.mxu0 0.0
        %992 = vmatprep.subr.mxu0 0.0
        %993 = vmatpush1.msra.mxu0 0.0
        %994 = vmatprep.subr.mxu0 0.0
        %995 = vmatpush1.msra.mxu0 0.0
        %996 = vmatprep.subr.mxu0 0.0
        %997 = vmatpush1.msra.mxu0 0.0
        %998 = vmatprep.subr.mxu0 0.0
        %999 = vmatpush1.msra.mxu0 0.0
        %1000 = vmatprep.subr.mxu0 0.0
        %1001 = vmatpush1.msra.mxu0 0.0
        %1002 = vmatprep.subr.mxu0 0.0
        %1003 = vmatpush1.msra.mxu0 0.0
        %1004 = vmatprep.subr.mxu0 0.0
        %1005 = vmatpush1.msra.mxu0 0.0
        %1006 = vmatprep.subr.mxu0 0.0
        %1007 = vmatpush1.msra.mxu0 0.0
        %1008 = vmatprep.subr.mxu0 0.0
        %1009 = vmatpush1.msra.mxu0 0.0
        %1010 = vmatprep.subr.mxu0 0.0
        %1011 = vmatpush1.msra.mxu0 0.0
        %1012 = vmatprep.subr.mxu0 0.0
        %1013 = vmatpush1.msra.mxu0 0.0
        %1014 = vmatprep.subr.mxu0 0.0
        %1015 = vmatpush1.msra.mxu0 0.0
        %1016 = vmatprep.subr.mxu0 0.0
        %1017 = vmatpush1.msra.mxu0 0.0
        %1018 = vmatprep.mubr.f32.mxu0 0.0
        %1019 = vmatmul.mubr.f32.gmra.mrb[0].mxu0 %v952
        %v1020 = vpop.f32.mrb[0].mxu0
        %v1021 = vadd.f32 0.0, %v1020
        %v1022 = vpop.f32.mrb[0].mxu0
        %1023 = vdwg.mxu0
        %v1024 = vadd.f32 %v950, %v1021
        %1025 = vst.msk [vmem:[#allocation2] sm:$0xff] %vm539, %v1024
        %p1026 = scmp.eq.s32.totalorder %s29, 3
        // Predicated region
        $region65: #{tpu_custom_call.1} parent=59 // pred_check
          %p1027 = pneg %p1026
        $region66: #{tpu_custom_call.1} parent=59 // pred_check_branch
          %1029 = sbr.rel (%p1027) target = $region68
        $region67: #{tpu_custom_call.1} parent=59 // pred_region
          %v1030 = vld [vmem:[#allocation2] sm:$0xff]
          %v1031 = vld [vmem:[%s9] sm:$0x1]
          %v1033 = vlaneseq
          %v1034 = vshrl.u32 %v1033, 7
          %v1035 = vsub.s32 0, %v1034
          %v1036 = vrot.slane %v1031, %v1035
          %v1038 = vadd.f32 %v1030, %v1036
          %1039 = vst.msk [vmem:[%s468] sm:$0xff] %vm539, %v1038
        $region68: #{tpu_custom_call.1} parent=59 // pred_fallthru
          _
        %s1040 = sand.u32 %s299, 1
        %s1041 = scalar_lea.sflag [#allocation4], %s1040
        %s1042 = sand.u32 %s299, 1
        %s1043 = smul.addr %s1042, 8
        %s1044 = scalar_lea.vmem [#allocation3], %s1043
        // Predicated region
        $region69: #{tpu_custom_call.1} parent=59 // pred_check
          %p1045 = pneg %p309
        $region70: #{tpu_custom_call.1} parent=59 // pred_check_branch
          %1047 = sbr.rel (%p1045) target = $region72
        $region71: #{tpu_custom_call.1} parent=59 // pred_region
          %s1049 = ssub.s32 128, 128
          %1050 = vsyncadd %s1041, %s1049
          %s1051 = smul.addr %s28, 128
          %s1052 = scalar_lea.hbm %s10, %s1051
          %s1054 = sshll.u32 %s1044, 4
          %s1055 = int_to_ptr.vmem [resolvable:$true] %s1054
          %1057 = dma.vmem_to_hbm [thread:$0]  %s1055, 128, %s1052, %s1041
        $region72: #{tpu_custom_call.1} parent=59 // pred_fallthru
          _
      $region60: #{tpu_custom_call.1} parent=5 // pred_fallthru
        _
      %p1058 = scmp.le.s32.totalorder 2, %s19
      // Predicated region
      $region73: #{tpu_custom_call.1} parent=5 // pred_check
        %p1059 = pneg %p1058
      $region74: #{tpu_custom_call.1} parent=5 // pred_check_branch
        %1061 = sbr.rel (%p1059) target = $region76
      $region75: #{tpu_custom_call.1} parent=5 // pred_region
        %s1062 = ssub.s32 %s19, 2
        // Predicated region
        $region77: #{tpu_custom_call.1} parent=75 // pred_check
          %p1063 = pneg %p315
        $region78: #{tpu_custom_call.1} parent=75 // pred_check_branch
          %1065 = sbr.rel (%p1063) target = $region80
        $region79: #{tpu_custom_call.1} parent=75 // pred_region
          %s1066 = sand.u32 %s300, 1
          %s1067 = scalar_lea.sflag [#allocation4], %s1066
          %s1068 = sand.u32 %s300, 1
          %s1069 = smul.addr %s1068, 8
          %s1070 = scalar_lea.vmem [#allocation3], %s1069
          %1071 = dma.done %s1067, 128
        $region80: #{tpu_custom_call.1} parent=75 // pred_fallthru
          _
      $region76: #{tpu_custom_call.1} parent=5 // pred_fallthru
        _
    $region6: #{tpu_custom_call.1} parent=1 // loop_footer
      %s23 = sadd.s32 1, %s19
    $region7: #{tpu_custom_call.1} parent=1 // loop_footer_branch
      %18 = sbr.rel target = $region3
    $region8: #{tpu_custom_call.1} parent=1 // loop_exit
      _
    %1072 = vsyncpa [#allocation4], 1
    %s1073 = scalar_lea.sflag [#allocation4], 1
    %1074 = vsyncpa %s1073, 1

</llo_original>
